<compile_context>
chip_gen: v7x
topology: tpu7x:2x2x1
jax: 0.10.0
libtpu: 0.0.40
codegen_flags: <defaults>
</compile_context>

<pallas_src>
import functools

import jax
import jax.numpy as jnp
from jax.experimental import pallas as pl
from jax.experimental.pallas import tpu as pltpu

LANES = 128
MAX_TILE_ROWS = 4096   # 4096*128*4B = 2 MiB per f32 input buffer
ACC_ROWS = 256         # 256*128*4B = 128 KiB accumulator scratch


def _round_up(a, b):
    return ((a + b - 1) // b) * b


def _charbonnier_kernel(x_ref, y_ref, out_ref, acc_ref, *,
                        eps2, rows, tile_rows, acc_rows,
                        blocks_per_core, total_blocks,
                        has_partial_tail, has_overhang):
    """Per-core partial sum of sqrt((x-y)^2 + eps2) over its grid slice.

    Scratch (acc_ref) is instantiated per-TensorCore under megacore sharding,
    so the i==0 re-init / += below never race between cores.
    """
    c = pl.program_id(0)   # core / partial-sum index ("parallel")
    i = pl.program_id(1)   # reduction step ("arbitrary", last axis)

    @pl.when(i == 0)
    def _():
        acc_ref[...] = jnp.zeros_like(acc_ref)

    x = x_ref[...].astype(jnp.float32)
    y = y_ref[...].astype(jnp.float32)
    diff = x - y
    val = jnp.sqrt(diff * diff + jnp.float32(eps2))

    block_idx = c * blocks_per_core + i

    def accum_full():
        # (tile_rows,128) -> (tile_rows//acc_rows, acc_rows, 128): tile-aligned
        # reshape; leading-axis sum is plain vreg adds on the VPU with a short
        # (acc_rows-wide) dependency chain.
        acc_ref[...] += val.reshape(-1, acc_rows, LANES).sum(axis=0)

    def accum_tail():
        # Only the single partial final block pays for the iota/compare/select.
        rows_in_last = rows - (total_blocks - 1) * tile_rows  # static Python int
        row_iota = jax.lax.broadcasted_iota(jnp.int32, (tile_rows, LANES), 0)
        masked = jnp.where(row_iota < rows_in_last, val, 0.0)
        acc_ref[...] += masked.reshape(-1, acc_rows, LANES).sum(axis=0)

    if not has_partial_tail and not has_overhang:
        accum_full()
    else:
        full_limit = total_blocks - 1 if has_partial_tail else total_blocks
        if full_limit > 0:
            pl.when(block_idx < full_limit)(accum_full)
        if has_partial_tail:
            pl.when(block_idx == total_blocks - 1)(accum_tail)
        # block_idx >= total_blocks (overhang on the 2-core split): skipped.

    @pl.when(i == pl.num_programs(1) - 1)
    def _():
        # Fold (acc_rows,128) -> (8,128) with VPU adds; cross-lane reduction is
        # left to the wrapper (removes in-kernel XLU + masked partial store).
        folded = acc_ref[...].reshape(-1, 8, LANES).sum(axis=0)
        out_ref[...] = folded.reshape(1, 8, LANES)


def charbonnier_loss(x, y, eps=0.001, reduction="mean", _max_tile_rows=MAX_TILE_ROWS):
    """Pallas TPU implementation of CharbonnierLoss.forward.

    x, y: arrays of identical shape (e.g. NCHW, f32 or bf16). Returns a scalar
    float32 (mean or sum of sqrt((x-y)^2 + eps^2)).
    """
    assert x.shape == y.shape, "x and y must have the same shape"
    eps2 = float(eps) * float(eps)

    n_elems = int(x.size)
    xf = jnp.ravel(x)
    yf = jnp.ravel(y)

    rows = n_elems // LANES
    n_bulk = rows * LANES
    n_tail = n_elems - n_bulk

    total = jnp.float32(0.0)

    if rows > 0:
        # Lane-aligned bulk: zero-copy reshape when n_elems % 128 == 0.
        x2 = xf[:n_bulk].reshape(rows, LANES)
        y2 = yf[:n_bulk].reshape(rows, LANES)

        # Row tile: multiple of 16 (covers bf16 sublane packing), capped so the
        # double-buffered footprint fits every generation's scoped VMEM.  When
        # the tile exceeds the accumulator width, keep it a multiple of it.
        tile_rows = min(_max_tile_rows, _round_up(rows, 16))
        if tile_rows > ACC_ROWS:
            tile_rows = min(_max_tile_rows, _round_up(tile_rows, ACC_ROWS))
        acc_rows = min(ACC_ROWS, tile_rows)
        if tile_rows % acc_rows != 0:   # only reachable with odd _max_tile_rows
            acc_rows = tile_rows

        total_blocks = (rows + tile_rows - 1) // tile_rows

        # Always engage both TensorCores when there is more than one block
        # (benefits v7x megacore; harmless sequential loop on v5e/v6e).
        ncores = 2 if total_blocks >= 2 else 1
        blocks_per_core = (total_blocks + ncores - 1) // ncores
        has_overhang = ncores * blocks_per_core > total_blocks
        has_partial_tail = total_blocks * tile_rows != rows

        if has_overhang:
            # Clamp the overhang step onto the last valid block; the kernel
            # skips its accumulation and Pallas skips the repeated DMA.
            in_idx = lambda c, i: (
                jnp.minimum(c * blocks_per_core + i, total_blocks - 1), 0)
        else:
            in_idx = lambda c, i: (c * blocks_per_core + i, 0)

        in_spec = pl.BlockSpec((tile_rows, LANES), in_idx)
        out_spec = pl.BlockSpec((1, 8, LANES), lambda c, i: (c, 0, 0))

        kernel = functools.partial(
            _charbonnier_kernel,
            eps2=eps2,
            rows=rows,
            tile_rows=tile_rows,
            acc_rows=acc_rows,
            blocks_per_core=blocks_per_core,
            total_blocks=total_blocks,
            has_partial_tail=has_partial_tail,
            has_overhang=has_overhang,
        )

        partials = pl.pallas_call(
            kernel,
            out_shape=jax.ShapeDtypeStruct((ncores, 8, LANES), jnp.float32),
            grid_spec=pltpu.PrefetchScalarGridSpec(
                num_scalar_prefetch=0,
                grid=(ncores, blocks_per_core),
                in_specs=[in_spec, in_spec],
                out_specs=out_spec,
                scratch_shapes=[pltpu.VMEM((acc_rows, LANES), jnp.float32)],
            ),
            compiler_params=pltpu.CompilerParams(
                dimension_semantics=("parallel", "arbitrary"),
            ),
        )(x2, y2)

        total = total + jnp.sum(partials)

    if n_tail > 0:
        # <=127 leftover elements: plain jnp, negligible next to the kernel.
        xt = xf[n_bulk:].astype(jnp.float32)
        yt = yf[n_bulk:].astype(jnp.float32)
        dt = xt - yt
        total = total + jnp.sum(jnp.sqrt(dt * dt + jnp.float32(eps2)))

    if reduction == "mean":
        return total / jnp.float32(n_elems)
    return total  # 'sum'


if __name__ == "__main__":
    key = jax.random.PRNGKey(0)
    kx, ky = jax.random.split(key)
    eps2 = jnp.float32(0.001 * 0.001)

    # Primary check: NCHW, lane-aligned, 'mean' reduction.
    shape = (2, 4, 16, 16)
    x = jax.random.normal(kx, shape, dtype=jnp.float32)
    y = jax.random.normal(ky, shape, dtype=jnp.float32)
    loss = jax.block_until_ready(charbonnier_loss(x, y, eps=0.001, reduction="mean"))
    d = x - y
    ref = jnp.mean(jnp.sqrt(d * d + eps2))
    assert jnp.allclose(loss, ref, rtol=1e-5, atol=1e-6), (loss, ref)

    # Secondary check: misaligned size (exercises the jnp tail path), 'sum'.
    shape2 = (3, 5, 7, 11)
    x2 = jax.random.normal(kx, shape2, dtype=jnp.float32)
    y2 = jax.random.normal(ky, shape2, dtype=jnp.float32)
    loss2 = jax.block_until_ready(
        charbonnier_loss(x2, y2, eps=0.001, reduction="sum"))
    d2 = x2 - y2
    ref2 = jnp.sum(jnp.sqrt(d2 * d2 + eps2))
    assert jnp.allclose(loss2, ref2, rtol=1e-5, atol=1e-5), (loss2, ref2)

    # Third check: force multiple blocks (small tile) to exercise the 2-core
    # split, the overhang skip, and the gated partial-block row mask.
    shape3 = (2, 3, 24, 32)   # 4608 elems -> 36 rows of 128
    x3 = jax.random.normal(kx, shape3, dtype=jnp.float32)
    y3 = jax.random.normal(ky, shape3, dtype=jnp.float32)
    loss3 = jax.block_until_ready(
        charbonnier_loss(x3, y3, eps=0.001, reduction="mean", _max_tile_rows=16))
    d3 = x3 - y3
    ref3 = jnp.mean(jnp.sqrt(d3 * d3 + eps2))
    assert jnp.allclose(loss3, ref3, rtol=1e-5, atol=1e-6), (loss3, ref3)

    print("KERNEL_OK")
</pallas_src>

<mosaic_0001>
module attributes {stable_mosaic.version = 11 : i64} {
  func.func @_charbonnier_kernel(%arg0: i32, %arg1: i32, %arg2: memref<16x128xf32, #tpu.memory_space<vmem>>, %arg3: memref<16x128xf32, #tpu.memory_space<vmem>>, %arg4: memref<1x8x128xf32, #tpu.memory_space<vmem>>, %arg5: memref<16x128xf32, #tpu.memory_space<vmem>>) attributes {dimension_semantics = [#tpu.dimension_semantics<parallel>, #tpu.dimension_semantics<arbitrary>], iteration_bounds = array<i64: 1, 1>, scalar_prefetch = 0 : i64, scratch_operands = 1 : i64, tpu.core_type = #tpu.core_type<tc>, window_params = [{transform_indices = @transform_0, window_bounds = array<i64: 16, 128>}, {transform_indices = @transform_1, window_bounds = array<i64: 16, 128>}, {transform_indices = @transform_2, window_bounds = array<i64: 1, 8, 128>}]} {
    %c0_i32 = arith.constant 0 : i32
    %0 = arith.cmpi eq, %arg1, %c0_i32 : i32
    %1 = arith.extui %0 : i1 to i32
    %c0_i32_0 = arith.constant 0 : i32
    %2 = arith.cmpi ne, %1, %c0_i32_0 : i32
    scf.if %2 {
      %cst_11 = arith.constant 0.000000e+00 : f32
      %18 = vector.broadcast %cst_11 : f32 to vector<16x128xf32>
      %c0_12 = arith.constant 0 : index
      %c0_13 = arith.constant 0 : index
      %19 = vector.load %arg5[%c0_12, %c0_13] : memref<16x128xf32, #tpu.memory_space<vmem>>, vector<16x128xf32>
      tpu.vector_store %arg5[%c0_12, %c0_13], %18 {strides = array<i32>} : memref<16x128xf32, #tpu.memory_space<vmem>>, vector<16x128xf32>,
    } else {
    }
    %c0 = arith.constant 0 : index
    %c0_1 = arith.constant 0 : index
    %3 = vector.load %arg2[%c0, %c0_1] : memref<16x128xf32, #tpu.memory_space<vmem>>, vector<16x128xf32>
    %c0_2 = arith.constant 0 : index
    %c0_3 = arith.constant 0 : index
    %4 = vector.load %arg3[%c0_2, %c0_3] : memref<16x128xf32, #tpu.memory_space<vmem>>, vector<16x128xf32>
    %5 = arith.subf %3, %4 : vector<16x128xf32>
    %6 = arith.mulf %5, %5 : vector<16x128xf32>
    %cst = arith.constant 9.99999997E-7 : f32
    %7 = vector.broadcast %cst : f32 to vector<16x128xf32>
    %8 = arith.addf %6, %7 : vector<16x128xf32>
    %9 = math.sqrt %8 : vector<16x128xf32>
    %c0_4 = arith.constant 0 : index
    %c0_5 = arith.constant 0 : index
    %10 = vector.load %arg5[%c0_4, %c0_5] : memref<16x128xf32, #tpu.memory_space<vmem>>, vector<16x128xf32>
    %11 = vector.shape_cast %9 : vector<16x128xf32> to vector<1x16x128xf32>
    %cst_6 = arith.constant dense<0.000000e+00> : vector<16x128xf32>
    %12 = vector.multi_reduction <add>, %11, %cst_6 [0] : vector<1x16x128xf32> to vector<16x128xf32>
    %13 = arith.addf %10, %12 : vector<16x128xf32>
    %c0_7 = arith.constant 0 : index
    %c0_8 = arith.constant 0 : index
    %14 = vector.load %arg5[%c0_7, %c0_8] : memref<16x128xf32, #tpu.memory_space<vmem>>, vector<16x128xf32>
    tpu.vector_store %arg5[%c0_7, %c0_8], %13 {strides = array<i32>} : memref<16x128xf32, #tpu.memory_space<vmem>>, vector<16x128xf32>,
    %c0_i32_9 = arith.constant 0 : i32
    %15 = arith.cmpi eq, %arg1, %c0_i32_9 : i32
    %16 = arith.extui %15 : i1 to i32
    %c0_i32_10 = arith.constant 0 : i32
    %17 = arith.cmpi ne, %16, %c0_i32_10 : i32
    scf.if %17 {
      %c0_11 = arith.constant 0 : index
      %c0_12 = arith.constant 0 : index
      %18 = vector.load %arg5[%c0_11, %c0_12] : memref<16x128xf32, #tpu.memory_space<vmem>>, vector<16x128xf32>
      %19 = vector.shape_cast %18 : vector<16x128xf32> to vector<2x8x128xf32>
      %cst_13 = arith.constant dense<0.000000e+00> : vector<8x128xf32>
      %20 = vector.multi_reduction <add>, %19, %cst_13 [0] : vector<2x8x128xf32> to vector<8x128xf32>
      %21 = vector.shape_cast %20 : vector<8x128xf32> to vector<1x8x128xf32>
      %c0_14 = arith.constant 0 : index
      %c0_15 = arith.constant 0 : index
      %c0_16 = arith.constant 0 : index
      %22 = vector.load %arg4[%c0_14, %c0_15, %c0_16] : memref<1x8x128xf32, #tpu.memory_space<vmem>>, vector<1x8x128xf32>
      tpu.vector_store %arg4[%c0_14, %c0_15, %c0_16], %21 {strides = array<i32>} : memref<1x8x128xf32, #tpu.memory_space<vmem>>, vector<1x8x128xf32>,
    } else {
    }
    return
  }
  func.func @transform_0(%arg0: i32, %arg1: i32) -> (i32, i32) {
    %c1_i32 = arith.constant 1 : i32
    %0 = arith.muli %arg0, %c1_i32 : i32
    %1 = arith.addi %0, %arg1 : i32
    %c0_i32 = arith.constant 0 : i32
    %c0_i32_0 = arith.constant 0 : i32
    return %1, %c0_i32 : i32, i32
  }
  func.func @transform_1(%arg0: i32, %arg1: i32) -> (i32, i32) {
    %c1_i32 = arith.constant 1 : i32
    %0 = arith.muli %arg0, %c1_i32 : i32
    %1 = arith.addi %0, %arg1 : i32
    %c0_i32 = arith.constant 0 : i32
    %c0_i32_0 = arith.constant 0 : i32
    return %1, %c0_i32 : i32, i32
  }
  func.func @transform_2(%arg0: i32, %arg1: i32) -> (i32, i32, i32) {
    %c0_i32 = arith.constant 0 : i32
    %c0_i32_0 = arith.constant 0 : i32
    %c0_i32_1 = arith.constant 0 : i32
    return %arg0, %c0_i32, %c0_i32_0 : i32, i32, i32
  }
}

</mosaic_0001>

<llo_original>
// kernel: tpu_custom_call.1
$region0: #{tpu_custom_call.1}
  #allocation0 [shape = 'u32[]', space=smem, size = 0x4, offset = 0x4, fixed_abs, tag = 'smem constant byte address 0x4 - core index']
  #allocation1 [shape = 'u32[144,128]{1,0:T(1,128)}', space=vmem, size = 0x12000, scoped, tag = 'internal scratch']
  #allocation2 [shape = 'f32[16,128]{1,0:T(8,128)}', space=vmem, size = 0x2000, scoped, tag = 'scratch operand']
  %s0 = inlined_call_operand.hbm [shape: f32[16,128], index: 0, kind: input, shape index: {}]
  %s1 = inlined_call_operand.hbm [shape: f32[16,128], index: 1, kind: input, shape index: {}]
  %s2 = inlined_call_operand.hbm [shape: f32[1,8,128], index: 2, kind: output, shape index: {}]
  %s3 = sld [smem:[#allocation0]]
  $region34: #{tpu_custom_call.1} parent=0
    _
  %s5 = ssub.s32 1, %s3
  %s6 = scalar_select 0, %s5, %s3
  $region1: #{tpu_custom_call.1} parent=0
    #allocation3 [shape = 'u8[8192]{0}', space=vmem, size = 0x2000, scoped, tag = 'input window, operand 0, single buffered']
    #allocation4 [shape = 's32[1]{0}', space=sflag, size = 0x4, scoped, tag = 'scoped memory for tpu_custom_call.1']
    #allocation5 [shape = 's32[1]{0}', space=sflag, size = 0x4, scoped, tag = 'scoped memory for tpu_custom_call.1']
    #allocation6 [shape = 'u8[8192]{0}', space=vmem, size = 0x2000, scoped, tag = 'input window, operand 1, single buffered']
    #allocation7 [shape = 's32[1]{0}', space=sflag, size = 0x4, scoped, tag = 'scoped memory for tpu_custom_call.1']
    #allocation8 [shape = 'u8[4096]{0}', space=vmem, size = 0x1000, scoped, tag = 'output window, operand 0, single buffered']
    %7 = vsyncpa [#allocation4], 0
    %8 = vsyncpa [#allocation7], 0
    %9 = vsyncpa [#allocation5], 0
    // Predicated region
    $region2: #{tpu_custom_call.1} parent=1 // pred_check
      _
    $region3: #{tpu_custom_call.1} parent=1 // pred_check_branch
      %11 = sbr.rel (0) target = $region5
    $region4: #{tpu_custom_call.1} parent=1 // pred_region
      %s12 = sadd.s32 0, 0
      %s13 = smul.u32 2, %s12
      %s15 = ssub.s32 256, 256
      %16 = vsyncadd [#allocation4], %s15
      %s17 = smul.addr %s13, 128
      %s18 = scalar_lea.hbm %s0, %s17
      %s19 = sshll.u32 [#allocation3], 4
      %s20 = int_to_ptr.vmem [resolvable:$true] %s19
      %25 = dma.hbm_to_vmem [thread:$0]  %s18, 256, %s20, [#allocation4], 128, 128, 8
    $region5: #{tpu_custom_call.1} parent=1 // pred_fallthru
      _
    // Predicated region
    $region6: #{tpu_custom_call.1} parent=1 // pred_check
      _
    $region7: #{tpu_custom_call.1} parent=1 // pred_check_branch
      %27 = sbr.rel (0) target = $region9
    $region8: #{tpu_custom_call.1} parent=1 // pred_region
      %s28 = sadd.s32 0, 0
      %s29 = smul.u32 2, %s28
      %s31 = ssub.s32 256, 256
      %32 = vsyncadd [#allocation7], %s31
      %s33 = smul.addr %s29, 128
      %s34 = scalar_lea.hbm %s1, %s33
      %s35 = sshll.u32 [#allocation6], 4
      %s36 = int_to_ptr.vmem [resolvable:$true] %s35
      %41 = dma.hbm_to_vmem [thread:$0]  %s34, 256, %s36, [#allocation7], 128, 128, 8
    $region9: #{tpu_custom_call.1} parent=1 // pred_fallthru
      _
    // Predicated region
    $region10: #{tpu_custom_call.1} parent=1 // pred_check
      _
    $region11: #{tpu_custom_call.1} parent=1 // pred_check_branch
      %43 = sbr.rel (0) target = $region13
    $region12: #{tpu_custom_call.1} parent=1 // pred_region
      %44 = dma.done [#allocation4], 256
    $region13: #{tpu_custom_call.1} parent=1 // pred_fallthru
      _
    // Predicated region
    $region14: #{tpu_custom_call.1} parent=1 // pred_check
      _
    $region15: #{tpu_custom_call.1} parent=1 // pred_check_branch
      %46 = sbr.rel (0) target = $region17
    $region16: #{tpu_custom_call.1} parent=1 // pred_region
      %47 = dma.done [#allocation7], 256
    $region17: #{tpu_custom_call.1} parent=1 // pred_fallthru
      _
    %s48 = sadd.s32 0, 0
    %s49 = smul.u32 2, %s48
    %s50 = sadd.s32 0, 0
    %s51 = smul.u32 2, %s50
    %p52 = scmp.eq.s32.totalorder 0, 0
    // Predicated region
    $region18: #{tpu_custom_call.1} parent=1 // pred_check
      %p53 = pneg %p52
    $region19: #{tpu_custom_call.1} parent=1 // pred_check_branch
      %55 = sbr.rel (%p53) target = $region21
    $region20: #{tpu_custom_call.1} parent=1 // pred_region
      %56 = vst [vmem:[#allocation2] sm:$0xff] 0.0
      %57 = vst [vmem:[#allocation2 + $0x8] sm:$0xff] 0.0
    $region21: #{tpu_custom_call.1} parent=1 // pred_fallthru
      _
    %v58 = vld [vmem:[#allocation3] sm:$0xff]
    %v59 = vld [vmem:[#allocation3 + $0x8] sm:$0xff]
    %v60 = vld [vmem:[#allocation6] sm:$0xff]
    %v61 = vld [vmem:[#allocation6 + $0x8] sm:$0xff]
    %v62 = vsub.f32 %v58, %v60
    %v63 = vsub.f32 %v59, %v61
    %v64 = vmul.f32 %v62, %v62
    %v65 = vmul.f32 %v63, %v63
    %v66 = vadd.f32 %v64, 1e-06
    %v67 = vadd.f32 %v65, 1e-06
    %v68 = vrsqrt.pop %v66
    %v69 = vmul.f32 %v66, %v68
    %vm70 = vcmp.eq.f32.partialorder %v66, inf
    %v71 = vsel %vm70, %v66, %v69
    %vm72 = vcmp.eq.f32.partialorder %v66, 0.0
    %v73 = vand.u32 %v66, 2147483648
    %v74 = vsel %vm72, %v73, %v71
    %v75 = vrsqrt.pop %v67
    %v76 = vmul.f32 %v67, %v75
    %vm77 = vcmp.eq.f32.partialorder %v67, inf
    %v78 = vsel %vm77, %v67, %v76
    %vm79 = vcmp.eq.f32.partialorder %v67, 0.0
    %v80 = vand.u32 %v67, 2147483648
    %v81 = vsel %vm79, %v80, %v78
    %v82 = vld [vmem:[#allocation2] sm:$0xff]
    %v83 = vld [vmem:[#allocation2 + $0x8] sm:$0xff]
    %v84 = vadd.f32 %v74, 0.0
    %v85 = vadd.f32 %v81, 0.0
    %v86 = vadd.f32 %v82, %v84
    %v87 = vadd.f32 %v83, %v85
    %88 = vst [vmem:[#allocation2] sm:$0xff] %v86
    %89 = vst [vmem:[#allocation2 + $0x8] sm:$0xff] %v87
    // Predicated region
    $region22: #{tpu_custom_call.1} parent=1 // pred_check
      %p90 = pneg %p52
    $region23: #{tpu_custom_call.1} parent=1 // pred_check_branch
      %92 = sbr.rel (%p90) target = $region25
    $region24: #{tpu_custom_call.1} parent=1 // pred_region
      %v93 = vld [vmem:[#allocation2] sm:$0xff]
      %v94 = vld [vmem:[#allocation2 + $0x8] sm:$0xff]
      %v95 = vadd.f32 %v93, %v94
      %96 = vst [vmem:[#allocation8] sm:$0xff] %v95
    $region25: #{tpu_custom_call.1} parent=1 // pred_fallthru
      _
    // Predicated region
    $region26: #{tpu_custom_call.1} parent=1 // pred_check
      _
    $region27: #{tpu_custom_call.1} parent=1 // pred_check_branch
      %98 = sbr.rel (0) target = $region29
    $region28: #{tpu_custom_call.1} parent=1 // pred_region
      %s100 = ssub.s32 128, 128
      %101 = vsyncadd [#allocation5], %s100
      %s103 = sshll.u32 [#allocation8], 4
      %s104 = int_to_ptr.vmem [resolvable:$true] %s103
      %106 = dma.vmem_to_hbm [thread:$0]  %s104, 128, %s2, [#allocation5]
    $region29: #{tpu_custom_call.1} parent=1 // pred_fallthru
      _
    // Predicated region
    $region30: #{tpu_custom_call.1} parent=1 // pred_check
      _
    $region31: #{tpu_custom_call.1} parent=1 // pred_check_branch
      %108 = sbr.rel (0) target = $region33
    $region32: #{tpu_custom_call.1} parent=1 // pred_region
      %109 = dma.done [#allocation5], 128
    $region33: #{tpu_custom_call.1} parent=1 // pred_fallthru
      _
    %110 = vsyncpa [#allocation4], 1
    %111 = vsyncpa [#allocation7], 1
    %112 = vsyncpa [#allocation5], 1

</llo_original>
